<compile_context>
chip_gen: v5e
topology: v5e:2x2
jax: 0.10.0
libtpu: 0.0.40
codegen_flags: <defaults>
</compile_context>

<pallas_src>
import math

import jax
import jax.numpy as jnp
from jax.experimental import pallas as pl
from jax.experimental.pallas import tpu as pltpu


def _round_up(a, m):
    return -(-a // m) * m


def _periodic_kernel(x_ref, w_ref, phase_ref, out_ref):
    # x_ref:     (TB, F)    f32  batch tile of raw features
    # w_ref:     (F, FDp)   f32  block-diagonal rows: 2*pi*coef[f] (cos|sin halves)
    #                            in lanes [f*D, (f+1)*D); zero-padded to FDp lanes
    # phase_ref: (1, FDp)   f32  per-feature [0]*H + [-pi/2]*H  (sin via cos shift)
    # out_ref:   (TB, FDp)  output dtype
    y = jnp.dot(x_ref[...], w_ref[...], preferred_element_type=jnp.float32)
    y = y + phase_ref[...]
    out_ref[...] = jnp.cos(y).astype(out_ref.dtype)


def periodic_embeddings(x, coefficients, *, batch_tile=None, out_dtype=jnp.float32):
    """x: (B, F) f32; coefficients: (F, D//2) f32 -> (B, F, D) out_dtype."""
    B, F = x.shape
    Fc, H = coefficients.shape
    assert F == Fc, "coefficients/features mismatch"
    D = 2 * H
    FD = F * D
    FDp = _round_up(FD, 128)                       # lane-aligned output width
    itemsize = jnp.dtype(out_dtype).itemsize
    sub = max(8, 32 // itemsize)                   # sublane packing: 8 f32 / 16 bf16 / 32 i8

    # ---- grid-invariant small data (built once in the wrapper) --------------
    coef2 = (2.0 * math.pi) * jnp.concatenate(
        [coefficients, coefficients], axis=-1).astype(jnp.float32)        # (F, D)
    # Block-diagonal rows: w[f, g*D + j] = (f == g) * coef2[f, j]
    w = (jnp.eye(F, dtype=jnp.float32)[:, :, None]
         * coef2[:, None, :]).reshape(F, FD)                              # (F, F*D)
    phase = jnp.tile(
        jnp.concatenate([jnp.zeros((H,), jnp.float32),
                         jnp.full((H,), -0.5 * math.pi, jnp.float32)]),
        F)[None, :]                                                       # (1, F*D)
    if FDp != FD:
        w = jnp.pad(w, ((0, 0), (0, FDp - FD)))
        phase = jnp.pad(phase, ((0, 0), (0, FDp - FD)))
    # TODO(synk): for very large n_features (W = F*FDp*4 bytes approaching VMEM),
    # add a feature-tile grid axis with a per-tile block-diagonal W instead of
    # keeping one resident W.

    # ---- batch tiling: 4-8 MiB lane-dense output blocks ---------------------
    row_bytes = FDp * itemsize
    b_sub = _round_up(B, sub)

    def rows_for(nbytes):
        return max(sub, (nbytes // max(row_bytes, 1)) // sub * sub)

    if batch_tile is None:
        hi = rows_for(8 << 20)                      # ~8 MiB output block ceiling
        lo = rows_for(4 << 20)                      # ~4 MiB floor (>=4 steps pref.)
        quarter = _round_up(-(-B // 4), sub)        # aim for >=4 grid steps
        bt = min(hi, max(lo, quarter))
        bt = max(sub, min(bt, b_sub))
    else:
        bt = max(sub, _round_up(int(batch_tile), sub))
        bt = min(bt, b_sub)

    # Double-buffered VMEM footprint (BlockSpec pipelining buffers every operand).
    const_bytes = 2 * (F * FDp * 4 + FDp * 4)

    def footprint(rows):
        return const_bytes + 2 * rows * (F * 4 + FDp * itemsize)

    budget = 48 << 20
    if footprint(bt) > budget and const_bytes < budget // 2:
        avail = budget - const_bytes
        per_row = 2 * (F * 4 + FDp * itemsize)
        bt = max(sub, (avail // per_row) // sub * sub)
        bt = min(bt, b_sub)

    grid = (pl.cdiv(B, bt),)
    vmem_limit = int(min(max(footprint(bt) + (4 << 20), 32 << 20), 56 << 20))

    out2d = pl.pallas_call(
        _periodic_kernel,
        out_shape=jax.ShapeDtypeStruct((B, FDp), out_dtype),
        grid_spec=pltpu.PrefetchScalarGridSpec(
            num_scalar_prefetch=0,
            grid=grid,
            in_specs=[
                pl.BlockSpec((bt, F), lambda i: (i, 0)),     # x batch tile
                pl.BlockSpec((F, FDp), lambda i: (0, 0)),    # weights (resident)
                pl.BlockSpec((1, FDp), lambda i: (0, 0)),    # phase (resident)
            ],
            out_specs=pl.BlockSpec((bt, FDp), lambda i: (i, 0)),
        ),
        compiler_params=pltpu.CompilerParams(
            dimension_semantics=("parallel",),
            vmem_limit_bytes=vmem_limit,
        ),
        cost_estimate=pl.CostEstimate(
            flops=2 * B * F * FDp,
            transcendentals=B * FDp,
            bytes_accessed=(B * F * 4 + F * FDp * 4 + FDp * 4
                            + B * FDp * itemsize),
        ),
    )(x, w, phase)

    if FDp != FD:
        out2d = out2d[:, :FD]          # drop zero-coef padding lanes
    # Free reshape back to the PyTorch layout.
    return out2d.reshape(B, F, D)


def periodic_embeddings_ref(x, coefficients):
    y = 2.0 * math.pi * coefficients[None] * x[..., None]
    return jnp.concatenate([jnp.cos(y), jnp.sin(y)], axis=-1)


if __name__ == "__main__":
    key = jax.random.PRNGKey(0)
    kx, kc, kx2, kc2 = jax.random.split(key, 4)

    # Case 1: shapes consistent with the module's forward.  batch_tile=16 forces
    # a 4-step grid with a ragged last block (50 = 3*16 + 2): exercises the
    # no-pad cdiv grid and masked edge handling.
    B, F, D, sigma = 50, 4, 32, 0.1
    x = jax.random.normal(kx, (B, F), dtype=jnp.float32)
    coefficients = sigma * jax.random.normal(kc, (F, D // 2), dtype=jnp.float32)

    ref = periodic_embeddings_ref(x, coefficients)

    out = jax.block_until_ready(periodic_embeddings(x, coefficients, batch_tile=16))
    assert out.shape == (B, F, D)
    assert jnp.allclose(out, ref, atol=2e-5, rtol=2e-5), float(
        jnp.max(jnp.abs(out - ref)))

    out_def = jax.block_until_ready(periodic_embeddings(x, coefficients))  # default tiling
    assert jnp.allclose(out_def, ref, atol=2e-5, rtol=2e-5), float(
        jnp.max(jnp.abs(out_def - ref)))

    # Case 2: F*D = 72 (not a multiple of 128) -> exercises lane padding + slice.
    B2, F2, D2 = 20, 3, 24
    x2 = jax.random.normal(kx2, (B2, F2), dtype=jnp.float32)
    coefficients2 = 0.05 * jax.random.normal(kc2, (F2, D2 // 2), dtype=jnp.float32)
    out2 = jax.block_until_ready(periodic_embeddings(x2, coefficients2))
    ref2 = periodic_embeddings_ref(x2, coefficients2)
    assert out2.shape == (B2, F2, D2)
    assert jnp.allclose(out2, ref2, atol=2e-5, rtol=2e-5), float(
        jnp.max(jnp.abs(out2 - ref2)))

    print("KERNEL_OK")
</pallas_src>

<mosaic_0001>
module attributes {stable_mosaic.version = 11 : i64} {
  func.func @_periodic_kernel(%arg0: i32, %arg1: memref<16x4xf32, #tpu.memory_space<vmem>>, %arg2: memref<4x128xf32, #tpu.memory_space<vmem>>, %arg3: memref<1x128xf32, #tpu.memory_space<vmem>>, %arg4: memref<16x128xf32, #tpu.memory_space<vmem>>) attributes {dimension_semantics = [#tpu.dimension_semantics<parallel>], iteration_bounds = array<i64: 4>, scalar_prefetch = 0 : i64, scratch_operands = 0 : i64, tpu.core_type = #tpu.core_type<tc>, window_params = [{transform_indices = @transform_0, window_bounds = array<i64: 16, 4>}, {pipeline_mode = #tpu.pipeline_mode<synchronous>, transform_indices = @transform_1, window_bounds = array<i64: 4, 128>}, {pipeline_mode = #tpu.pipeline_mode<synchronous>, transform_indices = @transform_2, window_bounds = array<i64: 1, 128>}, {transform_indices = @transform_3, window_bounds = array<i64: 16, 128>}]} {
    %c0 = arith.constant 0 : index
    %c0_0 = arith.constant 0 : index
    %0 = vector.load %arg1[%c0, %c0_0] : memref<16x4xf32, #tpu.memory_space<vmem>>, vector<16x4xf32>
    %c0_1 = arith.constant 0 : index
    %c0_2 = arith.constant 0 : index
    %1 = vector.load %arg2[%c0_1, %c0_2] : memref<4x128xf32, #tpu.memory_space<vmem>>, vector<4x128xf32>
    %cst = arith.constant dense<0.000000e+00> : vector<16x128xf32>
    %2 = tpu.matmul %0, %1, %cst {dimension_numbers = #tpu.dot_dimension_numbers<[1], [0], [0], [1], [0, 0, 1, 1], [], []>} : vector<16x4xf32>, vector<4x128xf32>, vector<16x128xf32> -> vector<16x128xf32>
    %c0_3 = arith.constant 0 : index
    %c0_4 = arith.constant 0 : index
    %3 = vector.load %arg3[%c0_3, %c0_4] : memref<1x128xf32, #tpu.memory_space<vmem>>, vector<1x128xf32>
    %4 = vector.broadcast %3 : vector<1x128xf32> to vector<16x128xf32>
    %5 = arith.addf %2, %4 : vector<16x128xf32>
    %6 = math.cos %5 : vector<16x128xf32>
    %c0_5 = arith.constant 0 : index
    %c0_6 = arith.constant 0 : index
    %7 = vector.load %arg4[%c0_5, %c0_6] : memref<16x128xf32, #tpu.memory_space<vmem>>, vector<16x128xf32>
    tpu.vector_store %arg4[%c0_5, %c0_6], %6 {strides = array<i32>} : memref<16x128xf32, #tpu.memory_space<vmem>>, vector<16x128xf32>,
    return
  }
  func.func @transform_0(%arg0: i32) -> (i32, i32) {
    %c0_i32 = arith.constant 0 : i32
    %c0_i32_0 = arith.constant 0 : i32
    return %arg0, %c0_i32 : i32, i32
  }
  func.func @transform_1(%arg0: i32) -> (i32, i32) {
    %c0_i32 = arith.constant 0 : i32
    %c0_i32_0 = arith.constant 0 : i32
    %c0_i32_1 = arith.constant 0 : i32
    return %c0_i32, %c0_i32_0 : i32, i32
  }
  func.func @transform_2(%arg0: i32) -> (i32, i32) {
    %c0_i32 = arith.constant 0 : i32
    %c0_i32_0 = arith.constant 0 : i32
    %c0_i32_1 = arith.constant 0 : i32
    return %c0_i32, %c0_i32_0 : i32, i32
  }
  func.func @transform_3(%arg0: i32) -> (i32, i32) {
    %c0_i32 = arith.constant 0 : i32
    %c0_i32_0 = arith.constant 0 : i32
    return %arg0, %c0_i32 : i32, i32
  }
}

</mosaic_0001>

<llo_original>
// kernel: tpu_custom_call.1
$region0: #{tpu_custom_call.1}
  #allocation0 [shape = 'u32[]', space=smem, size = 0x4, offset = 0x4, fixed_abs, tag = 'smem constant byte address 0x4 - core index']
  #allocation1 [shape = 'u32[72,128]{1,0:T(1,128)}', space=vmem, size = 0x9000, scoped, tag = 'internal scratch']
  %s0 = inlined_call_operand.vmem [shape: f32[50,4], index: 0, kind: input, shape index: {}]
  %s1 = inlined_call_operand.vmem [shape: f32[4,128], index: 1, kind: input, shape index: {}]
  %s2 = inlined_call_operand.vmem [shape: f32[1,128], index: 2, kind: input, shape index: {}]
  %s3 = inlined_call_operand.hbm [shape: f32[50,128], index: 3, kind: output, shape index: {}]
  %s4 = sld [smem:[#allocation0]]
  $region45: #{tpu_custom_call.1} parent=0
    _
  %s6 = ssub.s32 1, %s4
  %s7 = scalar_select 0, %s6, %s4
  $region1: #{tpu_custom_call.1} parent=0
    #allocation2 [shape = 'u8[16384]{0}', space=vmem, size = 0x4000, scoped, tag = 'output window, operand 0']
    #allocation3 [shape = 's32[2]{0}', space=sflag, size = 0x8, scoped, tag = 'scoped memory for tpu_custom_call.1']
    %8 = vsyncpa [#allocation3], 0
    %s9 = scalar_lea.sflag [#allocation3], 1
    %10 = vsyncpa %s9, 0
    loop: start=0, step=1, limit=6
    $region2: #{tpu_custom_call.1} parent=1 // loop_pre_header
      _
    $region3: #{tpu_custom_call.1} parent=1 // loop_header
      %s12 = sphi 0, %s16
      %p13 = scmp.ge.s32.totalorder %s12, 6
      %s22 = sphi 0, %s24
      %s25 = sphi 0, %s22
      %s26 = sphi 0, %s25
      %s42 = sphi 0, %s26
      %s46 = sphi 0, %s46
      %s48 = sphi 0, %s46
      %s49 = sphi 0, %s48
      %s63 = sphi 0, %s49
      %s67 = sphi 0, %s67
      %s69 = sphi 0, %s67
      %s70 = sphi 0, %s69
      %s84 = sphi 0, %s70
      %s90 = sphi 0, %s92
      %s93 = sphi 0, %s90
      %s94 = sphi 0, %s93
      %s110 = sphi 0, %s94
    $region4: #{tpu_custom_call.1} parent=1 // loop_header_branch
      %15 = sbr.rel (%p13) target = $region8
    $region5: #{tpu_custom_call.1} parent=1 // loop_body
      %s17 = ssub.s32 %s12, 1
      %s18 = ssub.s32 %s12, 2
      %s19 = sadd.s32 %s12, 1
      %s20 = ssub.s32 %s12, %s19
      %p21 = scmp.eq.s32.totalorder %s20, 0
      %s23 = sadd.s32 %s22, 1
      %s24 = scalar_select %p21, %s22, %s23
      %p27 = pneg %p21
      %p28 = scmp.eq.s32.totalorder %s12, 3
      %p29 = por %p27, %p28
      %p30 = scmp.ne.s32.totalorder %s22, %s25
      %p31 = scmp.eq.s32.totalorder %s12, 0
      %p32 = por %p30, %p31
      %p33 = scmp.ne.s32.totalorder %s22, %s25
      %p34 = scmp.eq.s32.totalorder %s17, 3
      %p35 = por %p33, %p34
      %p36 = scmp.ne.s32.totalorder %s25, %s26
      %p37 = scmp.eq.s32.totalorder %s17, 0
      %p38 = por %p36, %p37
      %p39 = scmp.ne.s32.totalorder %s25, %s26
      %p40 = scmp.eq.s32.totalorder %s18, 3
      %p41 = por %p39, %p40
      %p43 = scmp.ne.s32.totalorder %s26, %s42
      %p44 = scmp.eq.s32.totalorder %s18, 0
      %p45 = por %p43, %p44
      %s47 = sadd.s32 %s46, 1
      %p50 = scmp.eq.s32.totalorder %s12, 3
      %p51 = scmp.ne.s32.totalorder %s46, %s48
      %p52 = scmp.eq.s32.totalorder %s12, 0
      %p53 = por %p51, %p52
      %p54 = scmp.ne.s32.totalorder %s46, %s48
      %p55 = scmp.eq.s32.totalorder %s17, 3
      %p56 = por %p54, %p55
      %p57 = scmp.ne.s32.totalorder %s48, %s49
      %p58 = scmp.eq.s32.totalorder %s17, 0
      %p59 = por %p57, %p58
      %p60 = scmp.ne.s32.totalorder %s48, %s49
      %p61 = scmp.eq.s32.totalorder %s18, 3
      %p62 = por %p60, %p61
      %p64 = scmp.ne.s32.totalorder %s49, %s63
      %p65 = scmp.eq.s32.totalorder %s18, 0
      %p66 = por %p64, %p65
      %s68 = sadd.s32 %s67, 1
      %p71 = scmp.eq.s32.totalorder %s12, 3
      %p72 = scmp.ne.s32.totalorder %s67, %s69
      %p73 = scmp.eq.s32.totalorder %s12, 0
      %p74 = por %p72, %p73
      %p75 = scmp.ne.s32.totalorder %s67, %s69
      %p76 = scmp.eq.s32.totalorder %s17, 3
      %p77 = por %p75, %p76
      %p78 = scmp.ne.s32.totalorder %s69, %s70
      %p79 = scmp.eq.s32.totalorder %s17, 0
      %p80 = por %p78, %p79
      %p81 = scmp.ne.s32.totalorder %s69, %s70
      %p82 = scmp.eq.s32.totalorder %s18, 3
      %p83 = por %p81, %p82
      %p85 = scmp.ne.s32.totalorder %s70, %s84
      %p86 = scmp.eq.s32.totalorder %s18, 0
      %p87 = por %p85, %p86
      %s88 = ssub.s32 %s12, %s19
      %p89 = scmp.eq.s32.totalorder %s88, 0
      %s91 = sadd.s32 %s90, 1
      %s92 = scalar_select %p89, %s90, %s91
      %p95 = pneg %p89
      %p96 = scmp.eq.s32.totalorder %s12, 3
      %p97 = por %p95, %p96
      %p98 = scmp.ne.s32.totalorder %s90, %s93
      %p99 = scmp.eq.s32.totalorder %s12, 0
      %p100 = por %p98, %p99
      %p101 = scmp.ne.s32.totalorder %s90, %s93
      %p102 = scmp.eq.s32.totalorder %s17, 3
      %p103 = por %p101, %p102
      %p104 = scmp.ne.s32.totalorder %s93, %s94
      %p105 = scmp.eq.s32.totalorder %s17, 0
      %p106 = por %p104, %p105
      %p107 = scmp.ne.s32.totalorder %s93, %s94
      %p108 = scmp.eq.s32.totalorder %s18, 3
      %p109 = por %p107, %p108
      %p111 = scmp.ne.s32.totalorder %s94, %s110
      %p112 = scmp.eq.s32.totalorder %s18, 0
      %p113 = por %p111, %p112
      %p114 = scmp.le.s32.totalorder 1, %s12
      %p115 = scmp.lt.s32.totalorder %s12, 5
      %p116 = pnand %p114, %p115
      %p117 = pneg %p116
      // Predicated region
      $region9: #{tpu_custom_call.1} parent=5 // pred_check
        _
      $region10: #{tpu_custom_call.1} parent=5 // pred_check_branch
        %119 = sbr.rel (%p116) target = $region12
      $region11: #{tpu_custom_call.1} parent=5 // pred_region
        %s120 = ssub.s32 %s12, 1
        // Predicated region
        $region13: #{tpu_custom_call.1} parent=11 // pred_check
          %p121 = pneg %p59
        $region14: #{tpu_custom_call.1} parent=11 // pred_check_branch
          %123 = sbr.rel (%p121) target = $region16
        $region15: #{tpu_custom_call.1} parent=11 // pred_region
          _
        $region16: #{tpu_custom_call.1} parent=11 // pred_fallthru
          _
        // Predicated region
        $region17: #{tpu_custom_call.1} parent=11 // pred_check
          %p124 = pneg %p80
        $region18: #{tpu_custom_call.1} parent=11 // pred_check_branch
          %126 = sbr.rel (%p124) target = $region20
        $region19: #{tpu_custom_call.1} parent=11 // pred_region
          _
        $region20: #{tpu_custom_call.1} parent=11 // pred_fallthru
          _
      $region12: #{tpu_custom_call.1} parent=5 // pred_fallthru
        _
      %p127 = scmp.lt.s32.totalorder %s12, 4
      // Predicated region
      $region21: #{tpu_custom_call.1} parent=5 // pred_check
        %p128 = pneg %p127
      $region22: #{tpu_custom_call.1} parent=5 // pred_check_branch
        %130 = sbr.rel (%p128) target = $region24
      $region23: #{tpu_custom_call.1} parent=5 // pred_region
        // Predicated region
        $region25: #{tpu_custom_call.1} parent=23 // pred_check
          %p131 = pneg %p32
        $region26: #{tpu_custom_call.1} parent=23 // pred_check_branch
          %133 = sbr.rel (%p131) target = $region28
        $region27: #{tpu_custom_call.1} parent=23 // pred_region
          %s134 = smul.u32 2, %s12
          %s135 = ssub.s32 7, %s134
          %p136 = scmp.lt.s32.totalorder %s135, 2
          %s137 = scalar_select %p136, %s135, 2
          %s138 = smul.u32 8, %s137
          %p139 = scmp.lt.s32.totalorder %s134, 6
          %s140 = scalar_select %p139, %s134, 6
          %s141 = smul.addr %s140, 8
          %s142 = scalar_lea.vmem %s0, %s141
          %s143 = smul.u32 2, %s12
          %s144 = ssub.s32 7, %s143
          %p145 = scmp.lt.s32.totalorder %s144, 2
          %s146 = scalar_select %p145, %s144, 2
          %s147 = smul.u32 8, %s146
        $region28: #{tpu_custom_call.1} parent=23 // pred_fallthru
          _
      $region24: #{tpu_custom_call.1} parent=5 // pred_fallthru
        _
      %p148 = scmp.le.s32.totalorder 1, %s12
      %p149 = scmp.lt.s32.totalorder %s12, 5
      %p150 = pnand %p148, %p149
      %p151 = pneg %p150
      // Predicated region
      $region29: #{tpu_custom_call.1} parent=5 // pred_check
        _
      $region30: #{tpu_custom_call.1} parent=5 // pred_check_branch
        %153 = sbr.rel (%p150) target = $region32
      $region31: #{tpu_custom_call.1} parent=5 // pred_region
        %s154 = ssub.s32 %s12, 1
        %s155 = smul.u32 2, %s17
        %s156 = ssub.s32 7, %s155
        %p157 = scmp.lt.s32.totalorder %s156, 2
        %s158 = scalar_select %p157, %s156, 2
        %s159 = smul.u32 8, %s158
        %p160 = scmp.lt.s32.totalorder %s155, 6
        %s161 = scalar_select %p160, %s155, 6
        %s162 = smul.addr %s161, 8
        %s163 = scalar_lea.vmem %s0, %s162
        %p164 = pneg %p38
        %p165 = pneg %p35
        %p166 = pneg %p59
        %p167 = pneg %p56
        %p168 = pneg %p80
        %p169 = pneg %p77
        %p170 = pneg %p106
        %p171 = pneg %p103
        %s172 = sand.u32 %s93, 1
        %s173 = scalar_lea.sflag [#allocation3], %s172
        %s174 = sand.u32 %s93, 1
        %s175 = smul.addr %s174, 16
        %s176 = scalar_lea.vmem [#allocation2], %s175
        %s177 = smul.u32 2, %s17
        %s178 = ssub.s32 7, %s177
        %p179 = scmp.lt.s32.totalorder %s178, 2
        %s180 = scalar_select %p179, %s178, 2
        %s181 = smul.u32 8, %s180
        %p182 = scmp.lt.s32.totalorder %s177, 6
        %s183 = scalar_select %p182, %s177, 6
        %s184 = smul.addr %s183, 8
        %s185 = scalar_lea.vmem %s0, %s184
        %s186 = smul.u32 2, %s17
        %s187 = ssub.s32 7, %s186
        %p188 = scmp.lt.s32.totalorder %s187, 2
        %s189 = scalar_select %p188, %s187, 2
        %s190 = smul.u32 8, %s189
        %s191 = smul.u32 2, %s17
        %s192 = ssub.s32 7, %s191
        %p193 = scmp.lt.s32.totalorder %s192, 2
        %s194 = scalar_select %p193, %s192, 2
        %s195 = smul.u32 8, %s194
        %v196 = vld [vmem:[%s185] sm:$0xff]
        %v197 = vld [vmem:[%s185 + $0x8] sm:$0xff]
        %v198 = vld [vmem:[%s1] sm:$0xf]
        %v199 = vld [vmem:[%s2] sm:$0x1]
        %v201 = vperm.slane %v199, 0
        %vm203 = vcmask 31744
        %v205 = vsel %vm203, %v196, 0
        %v208 = vsel %vm203, %v197, 0
        %vm210 = vcmask 1043456
        %v212 = vsel %vm210, %v198, 0
        %214 = vmatpush.msra.mxu0 0.0
        %215 = vmatpush.msra.mxu0 0.0
        %216 = vmatpush.msra.mxu0 0.0
        %217 = vmatpush.msra.mxu0 0.0
        %218 = vmatpush.msra.mxu0 0.0
        %219 = vmatpush.msra.mxu0 0.0
        %220 = vmatpush.msra.mxu0 0.0
        %221 = vmatpush.msra.mxu0 0.0
        %222 = vmatpush.msra.mxu0 0.0
        %223 = vmatpush.msra.mxu0 0.0
        %224 = vmatpush.msra.mxu0 0.0
        %225 = vmatpush.msra.mxu0 0.0
        %226 = vmatpush.msra.mxu0 0.0
        %227 = vmatpush.msra.mxu0 0.0
        %228 = vmatpush.msra.mxu0 0.0
        %229 = vmatpush.msra.mxu0 %v212
        %230 = vmatmul.f32.gmra.mxu0 %v205
        %v231 = vpop.f32.mrf.mxu0
        %v232 = vadd.f32 %v201, %v231
        %233 = vmatmul.f32.gmra.mxu0 %v208
        %v234 = vpop.f32.mrf.mxu0
        %v235 = vadd.f32 %v201, %v234
        %236 = vdwg.mxu0
        %v237 = vand.u32 2147483647, %v232
        %vm238 = vcmp.le.f32.partialorder %v237, 0.7853982
        %vm239 = vcmp.lt.s32.totalorder %v232, 0
        %v240 = vand.u32 %v232, 2139095040
        %v241 = vshrl.u32 %v240, 23
        %v242 = vsub.s32 %v241, 127
        %v243 = vand.u32 2147483647, %v232
        %v244 = vand.u32 %v243, 8388607
        %v245 = vor.u32 %v244, 8388608
        %v246 = vsub.s32 0, %v245
        %v247 = vadd.s32 %v242, 1
        %vm248 = vcmp.gt.s32.totalorder %v247, 0
        %v249 = vsel %vm248, %v247, 0
        %v250 = vshrl.u32 %v249, 5
        %v251 = vand.u32 %v249, 31
        %v252 = vsub.s32 32, %v251
        %v253 = vshrl.u32 683565275, %v252
        %v254 = vshll.u32 683565275, %v251
        %v255 = vshrl.u32 2475754826, %v252
        %v256 = vor.u32 %v254, %v255
        %v257 = vshll.u32 2475754826, %v251
        %v258 = vshrl.u32 2131351028, %v252
        %v259 = vor.u32 %v257, %v258
        %v260 = vshll.u32 2131351028, %v251
        %v261 = vshrl.u32 2102212464, %v252
        %v262 = vor.u32 %v260, %v261
        %v263 = vshll.u32 2102212464, %v251
        %v264 = vshrl.u32 920167782, %v252
        %v265 = vor.u32 %v263, %v264
        %v266 = vshll.u32 920167782, %v251
        %v267 = vshrl.u32 1326507024, %v252
        %v268 = vor.u32 %v266, %v267
        %vm269 = vcmp.lt.s32.totalorder %v250, 1
        %vm270 = vcmp.lt.s32.totalorder %v250, 2
        %vm271 = vcmp.lt.s32.totalorder %v250, 3
        %vm272 = vcmp.lt.s32.totalorder %v250, 4
        %v273 = vsel %vm269, %v253, %v256
        %v274 = vsel %vm272, %v262, 2102212464
        %v275 = vsel %vm271, %v259, %v274
        %v276 = vsel %vm270, %v273, %v275
        %v277 = vsel %vm269, %v256, %v259
        %v278 = vsel %vm272, %v265, 920167782
        %v279 = vsel %vm271, %v262, %v278
        %v280 = vsel %vm270, %v277, %v279
        %v281 = vsel %vm269, %v259, %v262
        %v282 = vsel %vm272, %v268, 1326507024
        %v283 = vsel %vm271, %v265, %v282
        %v284 = vsel %vm270, %v281, %v283
        %v285 = vshll.u32 %v245, 8
        %v286 = vand.u32 %v285, 65535
        %v287 = vshrl.u32 %v285, 16
        %v288 = vand.u32 %v284, 65535
        %v289 = vshrl.u32 %v284, 16
        %v290 = vmul.u32 %v286, %v288
        %v291 = vmul.u32 %v286, %v289
        %v292 = vmul.u32 %v287, %v288
        %v293 = vmul.u32 %v287, %v289
        %v294 = vshll.u32 %v291, 16
        %v295 = vshrl.u32 %v291, 16
        %v296 = vshll.u32 %v292, 16
        %v297 = vshrl.u32 %v292, 16
        %vm298 = vc.u32 %v290, %v294
        %v299 = vsel %vm298, 1, 0
        %v300 = vadd.s32 %v290, %v294
        %v301 = vadd.s32 %v293, %v299
        %vm302 = vc.u32 %v300, %v296
        %v303 = vsel %vm302, 1, 0
        %v304 = vadd.s32 %v300, %v296
        %v305 = vadd.s32 %v301, %v303
        %v306 = vadd.s32 %v305, %v295
        %v307 = vadd.s32 %v306, %v297
        %v308 = vand.u32 %v285, 65535
        %v309 = vshrl.u32 %v285, 16
        %v310 = vand.u32 %v280, 65535
        %v311 = vshrl.u32 %v280, 16
        %v312 = vmul.u32 %v308, %v310
        %v313 = vmul.u32 %v308, %v311
        %v314 = vmul.u32 %v309, %v310
        %v315 = vmul.u32 %v309, %v311
        %v316 = vshll.u32 %v313, 16
        %v317 = vshrl.u32 %v313, 16
        %v318 = vshll.u32 %v314, 16
        %v319 = vshrl.u32 %v314, 16
        %vm320 = vc.u32 %v312, %v316
        %v321 = vsel %vm320, 1, 0
        %v322 = vadd.s32 %v312, %v316
        %v323 = vadd.s32 %v315, %v321
        %vm324 = vc.u32 %v322, %v318
        %v325 = vsel %vm324, 1, 0
        %v326 = vadd.s32 %v322, %v318
        %v327 = vadd.s32 %v323, %v325
        %v328 = vadd.s32 %v327, %v317
        %v329 = vadd.s32 %v328, %v319
        %v330 = vmul.u32 %v285, %v276
        %v331 = vadd.s32 %v307, %v326
        %vm332 = vc.u32 %v307, %v326
        %v333 = vadd.s32 %v329, 1
        %v334 = vsel %vm332, %v333, %v329
        %v335 = vadd.s32 %v330, %v334
        %v336 = vadd.s32 %v335, 536870912
        %v337 = vshrl.u32 %v336, 30
        %v338 = vshll.u32 %v337, 30
        %v339 = vsub.s32 %v335, %v338
        %vm340 = vcmp.lt.s32.totalorder %v339, 0
        %v341 = vsub.s32 0, %v339
        %v342 = vsel %vm340, %v341, %v339
        %v343 = vclz %v342
        %v344 = vsub.s32 %v343, 2
        %vm345 = vcmp.gt.s32.totalorder 0, %v344
        %v346 = vsel %vm345, 0, %v344
        %v347 = vsub.s32 32, %v346
        %v348 = vshll.u32 %v339, %v346
        %v349 = vshrl.u32 %v331, %v347
        %v350 = vor.u32 %v348, %v349
        %v351 = vsub.s32 4294967266, %v346
        %v352 = vadd.s32 %v351, 127
        %v353 = vshll.u32 %v352, 23
        %v354 = vor.u32 4788187, %v353
        %v355 = vand.u32 2147483647, %v354
        %v357 = vcvt.s32.f32 %v350
        %v358 = vmul.f32 %v357, %v355
        %v359 = vxor.u32 %v358, 2147483648
        %v360 = vsel %vm239, %v359, %v358
        %v361 = vsub.s32 4, %v337
        %v362 = vsel %vm239, %v361, %v337
        %v363 = vsel %vm238, %v232, %v360
        %v364 = vsel %vm238, 0, %v362
        %v365 = vmul.f32 %v363, %v363
        %v366 = vmul.f32 %v365, -0.001358992
        %v367 = vadd.f32 %v366, 0.041655596
        %v368 = vmul.f32 %v365, %v367
        %v369 = vadd.f32 %v368, -0.4999988
        %v370 = vmul.f32 %v365, %v369
        %v371 = vadd.f32 1.0, %v370
        %v372 = vmul.f32 %v363, %v363
        %v373 = vmul.f32 %v372, -0.00019511016
        %v374 = vadd.f32 %v373, 0.008332121
        %v375 = vmul.f32 %v372, %v374
        %v376 = vadd.f32 %v375, -0.16666654
        %v377 = vmul.f32 %v372, %v376
        %v378 = vadd.f32 %v377, 1.0
        %v379 = vmul.f32 %v378, %v363
        %vm380 = vweird.f32 %v232
        %v381 = vand.u32 %v364, 3
        %vm382 = vcmp.lt.s32.totalorder %v381, 2
        %vm383 = vcmp.eq.s32.totalorder %v381, 0
        %v384 = vxor.u32 %v379, 2147483648
        %v385 = vsel %vm383, %v371, %v384
        %vm386 = vcmp.eq.s32.totalorder %v381, 2
        %v387 = vxor.u32 %v371, 2147483648
        %v388 = vsel %vm386, %v387, %v379
        %v389 = vsel %vm382, %v385, %v388
        %v390 = vsel %vm380, nan, %v389
        %v391 = vand.u32 2147483647, %v235
        %vm392 = vcmp.le.f32.partialorder %v391, 0.7853982
        %vm393 = vcmp.lt.s32.totalorder %v235, 0
        %v394 = vand.u32 %v235, 2139095040
        %v395 = vshrl.u32 %v394, 23
        %v396 = vsub.s32 %v395, 127
        %v397 = vand.u32 2147483647, %v235
        %v398 = vand.u32 %v397, 8388607
        %v399 = vor.u32 %v398, 8388608
        %v400 = vsub.s32 0, %v399
        %v401 = vadd.s32 %v396, 1
        %vm402 = vcmp.gt.s32.totalorder %v401, 0
        %v403 = vsel %vm402, %v401, 0
        %v404 = vshrl.u32 %v403, 5
        %v405 = vand.u32 %v403, 31
        %v406 = vsub.s32 32, %v405
        %v407 = vshrl.u32 683565275, %v406
        %v408 = vshll.u32 683565275, %v405
        %v409 = vshrl.u32 2475754826, %v406
        %v410 = vor.u32 %v408, %v409
        %v411 = vshll.u32 2475754826, %v405
        %v412 = vshrl.u32 2131351028, %v406
        %v413 = vor.u32 %v411, %v412
        %v414 = vshll.u32 2131351028, %v405
        %v415 = vshrl.u32 2102212464, %v406
        %v416 = vor.u32 %v414, %v415
        %v417 = vshll.u32 2102212464, %v405
        %v418 = vshrl.u32 920167782, %v406
        %v419 = vor.u32 %v417, %v418
        %v420 = vshll.u32 920167782, %v405
        %v421 = vshrl.u32 1326507024, %v406
        %v422 = vor.u32 %v420, %v421
        %vm423 = vcmp.lt.s32.totalorder %v404, 1
        %vm424 = vcmp.lt.s32.totalorder %v404, 2
        %vm425 = vcmp.lt.s32.totalorder %v404, 3
        %vm426 = vcmp.lt.s32.totalorder %v404, 4
        %v427 = vsel %vm423, %v407, %v410
        %v428 = vsel %vm426, %v416, 2102212464
        %v429 = vsel %vm425, %v413, %v428
        %v430 = vsel %vm424, %v427, %v429
        %v431 = vsel %vm423, %v410, %v413
        %v432 = vsel %vm426, %v419, 920167782
        %v433 = vsel %vm425, %v416, %v432
        %v434 = vsel %vm424, %v431, %v433
        %v435 = vsel %vm423, %v413, %v416
        %v436 = vsel %vm426, %v422, 1326507024
        %v437 = vsel %vm425, %v419, %v436
        %v438 = vsel %vm424, %v435, %v437
        %v439 = vshll.u32 %v399, 8
        %v440 = vand.u32 %v439, 65535
        %v441 = vshrl.u32 %v439, 16
        %v442 = vand.u32 %v438, 65535
        %v443 = vshrl.u32 %v438, 16
        %v444 = vmul.u32 %v440, %v442
        %v445 = vmul.u32 %v440, %v443
        %v446 = vmul.u32 %v441, %v442
        %v447 = vmul.u32 %v441, %v443
        %v448 = vshll.u32 %v445, 16
        %v449 = vshrl.u32 %v445, 16
        %v450 = vshll.u32 %v446, 16
        %v451 = vshrl.u32 %v446, 16
        %vm452 = vc.u32 %v444, %v448
        %v453 = vsel %vm452, 1, 0
        %v454 = vadd.s32 %v444, %v448
        %v455 = vadd.s32 %v447, %v453
        %vm456 = vc.u32 %v454, %v450
        %v457 = vsel %vm456, 1, 0
        %v458 = vadd.s32 %v454, %v450
        %v459 = vadd.s32 %v455, %v457
        %v460 = vadd.s32 %v459, %v449
        %v461 = vadd.s32 %v460, %v451
        %v462 = vand.u32 %v439, 65535
        %v463 = vshrl.u32 %v439, 16
        %v464 = vand.u32 %v434, 65535
        %v465 = vshrl.u32 %v434, 16
        %v466 = vmul.u32 %v462, %v464
        %v467 = vmul.u32 %v462, %v465
        %v468 = vmul.u32 %v463, %v464
        %v469 = vmul.u32 %v463, %v465
        %v470 = vshll.u32 %v467, 16
        %v471 = vshrl.u32 %v467, 16
        %v472 = vshll.u32 %v468, 16
        %v473 = vshrl.u32 %v468, 16
        %vm474 = vc.u32 %v466, %v470
        %v475 = vsel %vm474, 1, 0
        %v476 = vadd.s32 %v466, %v470
        %v477 = vadd.s32 %v469, %v475
        %vm478 = vc.u32 %v476, %v472
        %v479 = vsel %vm478, 1, 0
        %v480 = vadd.s32 %v476, %v472
        %v481 = vadd.s32 %v477, %v479
        %v482 = vadd.s32 %v481, %v471
        %v483 = vadd.s32 %v482, %v473
        %v484 = vmul.u32 %v439, %v430
        %v485 = vadd.s32 %v461, %v480
        %vm486 = vc.u32 %v461, %v480
        %v487 = vadd.s32 %v483, 1
        %v488 = vsel %vm486, %v487, %v483
        %v489 = vadd.s32 %v484, %v488
        %v490 = vadd.s32 %v489, 536870912
        %v491 = vshrl.u32 %v490, 30
        %v492 = vshll.u32 %v491, 30
        %v493 = vsub.s32 %v489, %v492
        %vm494 = vcmp.lt.s32.totalorder %v493, 0
        %v495 = vsub.s32 0, %v493
        %v496 = vsel %vm494, %v495, %v493
        %v497 = vclz %v496
        %v498 = vsub.s32 %v497, 2
        %vm499 = vcmp.gt.s32.totalorder 0, %v498
        %v500 = vsel %vm499, 0, %v498
        %v501 = vsub.s32 32, %v500
        %v502 = vshll.u32 %v493, %v500
        %v503 = vshrl.u32 %v485, %v501
        %v504 = vor.u32 %v502, %v503
        %v505 = vsub.s32 4294967266, %v500
        %v506 = vadd.s32 %v505, 127
        %v507 = vshll.u32 %v506, 23
        %v508 = vor.u32 4788187, %v507
        %v509 = vand.u32 2147483647, %v508
        %v511 = vcvt.s32.f32 %v504
        %v512 = vmul.f32 %v511, %v509
        %v513 = vxor.u32 %v512, 2147483648
        %v514 = vsel %vm393, %v513, %v512
        %v515 = vsub.s32 4, %v491
        %v516 = vsel %vm393, %v515, %v491
        %v517 = vsel %vm392, %v235, %v514
        %v518 = vsel %vm392, 0, %v516
        %v519 = vmul.f32 %v517, %v517
        %v520 = vmul.f32 %v519, -0.001358992
        %v521 = vadd.f32 %v520, 0.041655596
        %v522 = vmul.f32 %v519, %v521
        %v523 = vadd.f32 %v522, -0.4999988
        %v524 = vmul.f32 %v519, %v523
        %v525 = vadd.f32 1.0, %v524
        %v526 = vmul.f32 %v517, %v517
        %v527 = vmul.f32 %v526, -0.00019511016
        %v528 = vadd.f32 %v527, 0.008332121
        %v529 = vmul.f32 %v526, %v528
        %v530 = vadd.f32 %v529, -0.16666654
        %v531 = vmul.f32 %v526, %v530
        %v532 = vadd.f32 %v531, 1.0
        %v533 = vmul.f32 %v532, %v517
        %vm534 = vweird.f32 %v235
        %v535 = vand.u32 %v518, 3
        %vm536 = vcmp.lt.s32.totalorder %v535, 2
        %vm537 = vcmp.eq.s32.totalorder %v535, 0
        %v538 = vxor.u32 %v533, 2147483648
        %v539 = vsel %vm537, %v525, %v538
        %vm540 = vcmp.eq.s32.totalorder %v535, 2
        %v541 = vxor.u32 %v525, 2147483648
        %v542 = vsel %vm540, %v541, %v533
        %v543 = vsel %vm536, %v539, %v542
        %v544 = vsel %vm534, nan, %v543
        %545 = vst [vmem:[%s176] sm:$0xff] %v390
        %546 = vst [vmem:[%s176 + $0x8] sm:$0xff] %v544
        %s547 = sand.u32 %s93, 1
        %s548 = scalar_lea.sflag [#allocation3], %s547
        %s549 = sand.u32 %s93, 1
        %s550 = smul.addr %s549, 16
        %s551 = scalar_lea.vmem [#allocation2], %s550
        // Predicated region
        $region33: #{tpu_custom_call.1} parent=31 // pred_check
          %p552 = pneg %p103
        $region34: #{tpu_custom_call.1} parent=31 // pred_check_branch
          %554 = sbr.rel (%p552) target = $region36
        $region35: #{tpu_custom_call.1} parent=31 // pred_region
          %s555 = smul.u32 2, %s17
          %s556 = ssub.s32 7, %s555
          %p557 = scmp.lt.s32.totalorder %s556, 2
          %s558 = scalar_select %p557, %s556, 2
          %s559 = smul.u32 8, %s558
          %s560 = ssub.s32 16, %s559
          %s561 = sshll.u32 %s560, 4
          %562 = vsyncadd %s548, %s561
          %p563 = scmp.ne.s32.totalorder 0, %s559
          %s564 = smul.addr %s555, 8
          %s565 = scalar_lea.hbm %s3, %s564
          %s566 = smul.u32 8, %s558
          %s567 = sshll.u32 %s551, 4
          %s568 = int_to_ptr.vmem [resolvable:$true] %s567
          %s569 = sshll.u32 %s565, 4
          %s570 = int_to_ptr.hbm [resolvable:$true] %s569
          %s571 = sshll.u32 %s566, 4
          %575 = dma.vmem_to_hbm [thread:$0]  (%p563), %s568, %s571, %s570, %s548, 128, 128, 8
        $region36: #{tpu_custom_call.1} parent=31 // pred_fallthru
          _
      $region32: #{tpu_custom_call.1} parent=5 // pred_fallthru
        _
      %p576 = scmp.le.s32.totalorder 2, %s12
      // Predicated region
      $region37: #{tpu_custom_call.1} parent=5 // pred_check
        %p577 = pneg %p576
      $region38: #{tpu_custom_call.1} parent=5 // pred_check_branch
        %579 = sbr.rel (%p577) target = $region40
      $region39: #{tpu_custom_call.1} parent=5 // pred_region
        %s580 = ssub.s32 %s12, 2
        // Predicated region
        $region41: #{tpu_custom_call.1} parent=39 // pred_check
          %p581 = pneg %p109
        $region42: #{tpu_custom_call.1} parent=39 // pred_check_branch
          %583 = sbr.rel (%p581) target = $region44
        $region43: #{tpu_custom_call.1} parent=39 // pred_region
          %s584 = sand.u32 %s94, 1
          %s585 = scalar_lea.sflag [#allocation3], %s584
          %s586 = sand.u32 %s94, 1
          %s587 = smul.addr %s586, 16
          %s588 = scalar_lea.vmem [#allocation2], %s587
          %590 = dma.done %s585, 256
        $region44: #{tpu_custom_call.1} parent=39 // pred_fallthru
          _
      $region40: #{tpu_custom_call.1} parent=5 // pred_fallthru
        _
    $region6: #{tpu_custom_call.1} parent=1 // loop_footer
      %s16 = sadd.s32 1, %s12
    $region7: #{tpu_custom_call.1} parent=1 // loop_footer_branch
      %11 = sbr.rel target = $region3
    $region8: #{tpu_custom_call.1} parent=1 // loop_exit
      _
    %591 = vsyncpa [#allocation3], 1
    %s592 = scalar_lea.sflag [#allocation3], 1
    %593 = vsyncpa %s592, 1

</llo_original>
